<compile_context>
chip_gen: v6e
topology: v6e:2x2x1
jax: 0.10.0
libtpu: 0.0.40
codegen_flags: <defaults>
</compile_context>

<pallas_src>
import jax
import jax.numpy as jnp
from jax.experimental import pallas as pl
from jax.experimental.pallas import tpu as pltpu


def _round_up(x, m):
    return (x + m - 1) // m * m


_SUBLANE = 16  # multiple of the f32 (8) and bf16 (16) sublane tile heights


def _pick_row_tile(n, row_tile):
    tb = min(_round_up(row_tile, _SUBLANE), _round_up(n, _SUBLANE))
    # Keep >= 2 grid steps when possible so dimension_semantics=("parallel",)
    # can actually shard row blocks across the two TensorCores on v7x.
    if pl.cdiv(n, tb) < 2 and n > _SUBLANE:
        tb = _round_up(pl.cdiv(n, 2), _SUBLANE)
    return tb


# ----------------------------- kernels --------------------------------------

def _weak_kernel(x_ref, w_ref, b_ref, o_ref):
    # out = [f | c] @ [Wf ; Wc] + b      (single MXU pass)
    acc = jnp.dot(x_ref[...], w_ref[...], preferred_element_type=jnp.float32)
    o_ref[...] = (acc + b_ref[...]).astype(o_ref.dtype)


def _strong_kernel(x_ref, w_ref, b_ref, o_ref):
    # g = [f | c] @ [[W, 0], [0, We]] = [f@W | c@We]   (single MXU pass),
    # then the 'strong' gating epilogue in f32.
    out_f = o_ref.shape[-1]
    g = jnp.dot(x_ref[...], w_ref[...], preferred_element_type=jnp.float32)
    o_ref[...] = ((g[:, :out_f] + b_ref[...]) * g[:, out_f:]).astype(o_ref.dtype)


def _pure_kernel(f_ref, c_ref, w_ref, b_ref, o_ref):
    # Bilinear: out[n,o] = sum_{i,j} f[n,i] * W2d[i, j*O + o] * c[n,j] + b[o]
    # One MXU matmul contracts over in_features; then a small static
    # cond_features-way weighted reduction over out_f-wide column slices.
    out_f = o_ref.shape[-1]
    cond_f = c_ref.shape[-1]
    g = jnp.dot(f_ref[...], w_ref[...], preferred_element_type=jnp.float32)
    c = c_ref[...].astype(jnp.float32)
    acc = c[:, 0:1] * g[:, :out_f]
    for j in range(1, cond_f):                 # static & small (cond_features)
        acc = acc + c[:, j:j + 1] * g[:, j * out_f:(j + 1) * out_f]
    o_ref[...] = (acc + b_ref[...]).astype(o_ref.dtype)


# --------------------------- weight preparation ------------------------------

def prepare_params(params, method, compute_dtype=jnp.bfloat16):
    """One-time weight prep (stack / block-diag / transpose / cast), hoisted
    out of the hot path so weights are not rewritten in HBM on every call."""
    b = params["b"].reshape(1, -1).astype(jnp.float32)
    if method == "weak":
        w = jnp.concatenate([params["w_f"], params["w_c"]], axis=0)
        return {"w": w.astype(compute_dtype), "b": b}
    if method == "strong":
        w, we = params["w"], params["w_e"]
        in_f, out_f = w.shape
        cond_f = we.shape[0]
        w_blk = jnp.concatenate(
            [jnp.concatenate([w, jnp.zeros((in_f, out_f), w.dtype)], axis=1),
             jnp.concatenate([jnp.zeros((cond_f, out_f), we.dtype), we], axis=1)],
            axis=0)                                        # [I+C, 2*O]
        return {"w": w_blk.astype(compute_dtype), "b": b}
    if method == "pure":
        # torch Bilinear weight [O, I, C] -> [I, C*O] (single-matmul layout)
        w = jnp.transpose(params["w"], (1, 2, 0))          # [I, C, O]
        w = w.reshape(w.shape[0], -1)                      # [I, C*O]
        return {"w": w.astype(compute_dtype), "b": b}
    raise ValueError("Unknown method, should be 'weak', 'strong', or 'pure'.")


# ------------------------------- wrapper -------------------------------------

def conditional_linear(f_in, cond_vec, prepared, method,
                       add_vec=None, add_index=None,
                       row_tile=1024, compute_dtype=jnp.bfloat16):
    """f_in: [N, in_features], cond_vec: [N, cond_features]; returns f32 [N, out]."""
    n, in_f = f_in.shape
    cond_f = cond_vec.shape[-1]
    out_f = prepared["b"].shape[-1]
    w, b = prepared["w"], prepared["b"]

    tb = _pick_row_tile(n, row_tile)
    grid = (pl.cdiv(n, tb),)      # no row padding: Pallas masks the tail block

    out_shape = jax.ShapeDtypeStruct((n, out_f), jnp.float32)
    out_spec = pl.BlockSpec((tb, out_f), lambda r: (r, 0))
    b_spec = pl.BlockSpec((1, out_f), lambda r: (0, 0))
    w_spec = pl.BlockSpec(w.shape, lambda r: (0, 0))        # resident weights
    # TODO(synk): for large out_features add a second ("parallel") grid axis
    # tiling the weight/output columns instead of keeping weights resident.

    itemsize = jnp.dtype(compute_dtype).itemsize
    if method in ("weak", "strong"):
        x = jnp.concatenate([f_in, cond_vec], axis=-1).astype(compute_dtype)
        kernel = _weak_kernel if method == "weak" else _strong_kernel
        inputs = (x, w, b)
        in_specs = [pl.BlockSpec((tb, in_f + cond_f), lambda r: (r, 0)),
                    w_spec, b_spec]
        flops = 2 * n * (in_f + cond_f) * w.shape[-1] + 2 * n * out_f
        scratch = tb * w.shape[-1] * 4
    elif method == "pure":
        f = f_in.astype(compute_dtype)
        c = cond_vec.astype(compute_dtype)
        kernel = _pure_kernel
        inputs = (f, c, w, b)
        in_specs = [pl.BlockSpec((tb, in_f), lambda r: (r, 0)),
                    pl.BlockSpec((tb, cond_f), lambda r: (r, 0)),
                    w_spec, b_spec]
        flops = 2 * n * in_f * cond_f * out_f + 3 * n * cond_f * out_f
        scratch = tb * cond_f * out_f * 4
    else:
        raise ValueError("Unknown method, should be 'weak', 'strong', or 'pure'.")

    w_bytes = w.size * itemsize + b.size * 4
    stream = tb * (in_f + cond_f) * itemsize + tb * out_f * 4
    bytes_accessed = int(n * (in_f + cond_f) * itemsize + n * out_f * 4 + w_bytes)
    need = 2 * stream + w_bytes + scratch                    # double-buffered
    vmem_limit = int(min(64 << 20, max(16 << 20, 2 * need + (2 << 20))))

    out = pl.pallas_call(
        kernel,
        out_shape=out_shape,
        grid=grid,
        in_specs=in_specs,
        out_specs=out_spec,
        compiler_params=pltpu.CompilerParams(
            dimension_semantics=("parallel",),
            vmem_limit_bytes=vmem_limit),
        cost_estimate=pl.CostEstimate(flops=int(flops), transcendentals=0,
                                      bytes_accessed=bytes_accessed),
    )(*inputs)

    if add_vec is not None:
        # TODO(synk): data-dependent scatter-add stays in the JAX wrapper
        # (matches `f_out[add_index] += add_vec`); not fused into the kernel.
        out = out.at[add_index].add(add_vec)
    return out


# -------------------------- init & reference ---------------------------------

def _init_params(key, in_f, cond_f, out_f, method):
    """Deterministic init mimicking nn.Linear / nn.Bilinear defaults."""
    k0, k1, k2 = jax.random.split(key, 3)
    if method == "weak":
        fan_in = in_f + cond_f
        lim = 1.0 / jnp.sqrt(fan_in)
        w = jax.random.uniform(k0, (fan_in, out_f), jnp.float32, -lim, lim)
        return {"w_f": w[:in_f], "w_c": w[in_f:],
                "b": jax.random.uniform(k1, (out_f,), jnp.float32, -lim, lim)}
    if method == "strong":
        lim1 = 1.0 / jnp.sqrt(in_f)
        lim2 = 1.0 / jnp.sqrt(cond_f)
        return {"w": jax.random.uniform(k0, (in_f, out_f), jnp.float32, -lim1, lim1),
                "b": jax.random.uniform(k1, (out_f,), jnp.float32, -lim1, lim1),
                "w_e": jax.random.uniform(k2, (cond_f, out_f), jnp.float32,
                                          -lim2, lim2)}
    # pure (nn.Bilinear): weight [out, in1, in2], bound = 1/sqrt(in1)
    lim = 1.0 / jnp.sqrt(in_f)
    return {"w": jax.random.uniform(k0, (out_f, in_f, cond_f), jnp.float32,
                                    -lim, lim),
            "b": jax.random.uniform(k1, (out_f,), jnp.float32, -lim, lim)}


def _reference(f_in, cond_vec, params, method, add_vec=None, add_index=None):
    if method == "weak":
        w = jnp.concatenate([params["w_f"], params["w_c"]], axis=0)
        out = jnp.concatenate([f_in, cond_vec], axis=-1) @ w + params["b"]
    elif method == "strong":
        out = (f_in @ params["w"] + params["b"]) * (cond_vec @ params["w_e"])
    else:
        out = jnp.einsum("ni,oij,nj->no", f_in, params["w"], cond_vec) + params["b"]
    if add_vec is not None:
        out = out.at[add_index].add(add_vec)
    return out


if __name__ == "__main__":
    key = jax.random.PRNGKey(0)
    kf, kc, ka, kp = jax.random.split(key, 4)

    # Small shapes: N=16 atom pairs, in_features=16, cond_features=8, out=16
    N, IN_F, COND_F, OUT_F = 16, 16, 8, 16
    f_in = jax.random.normal(kf, (N, IN_F), jnp.float32)
    cond_vec = jax.random.normal(kc, (N, COND_F), jnp.float32)

    for idx, method in enumerate(("weak", "strong", "pure")):
        params = _init_params(jax.random.fold_in(kp, idx),
                              IN_F, COND_F, OUT_F, method)
        ref = _reference(f_in, cond_vec, params, method)

        # f32 compute path: tight agreement with the reference.
        prep32 = prepare_params(params, method, compute_dtype=jnp.float32)
        out32 = jax.block_until_ready(
            conditional_linear(f_in, cond_vec, prep32, method,
                               compute_dtype=jnp.float32))
        assert out32.shape == (N, OUT_F)
        assert jnp.allclose(out32, ref, atol=1e-3, rtol=1e-3), \
            f"mismatch f32 ({method})"

        # bf16 compute path (default; v6e/v7x MXU-native): looser tolerance.
        prep16 = prepare_params(params, method)
        out16 = jax.block_until_ready(
            conditional_linear(f_in, cond_vec, prep16, method))
        assert out16.shape == (N, OUT_F)
        assert jnp.allclose(out16, ref, atol=1e-1, rtol=1e-1), \
            f"mismatch bf16 ({method})"

    # Partial tail block: N not a multiple of the row tile, no wrapper padding.
    N2 = 40
    f2 = jax.random.normal(jax.random.fold_in(kf, 1), (N2, IN_F), jnp.float32)
    c2 = jax.random.normal(jax.random.fold_in(kc, 1), (N2, COND_F), jnp.float32)
    params_w = _init_params(jax.random.fold_in(kp, 0), IN_F, COND_F, OUT_F, "weak")
    prep_w32 = prepare_params(params_w, "weak", compute_dtype=jnp.float32)
    out2 = jax.block_until_ready(
        conditional_linear(f2, c2, prep_w32, "weak", compute_dtype=jnp.float32))
    ref2 = _reference(f2, c2, params_w, "weak")
    assert jnp.allclose(out2, ref2, atol=1e-3, rtol=1e-3), "mismatch (tail block)"

    # add_vec / add_index path (f_out[add_index] += add_vec)
    add_index = jnp.array([0, 3, 7], dtype=jnp.int32)
    add_vec = jax.random.normal(ka, (3, OUT_F), jnp.float32)
    out3 = jax.block_until_ready(
        conditional_linear(f_in, cond_vec, prep_w32, "weak",
                           add_vec=add_vec, add_index=add_index,
                           compute_dtype=jnp.float32))
    ref3 = _reference(f_in, cond_vec, params_w, "weak",
                      add_vec=add_vec, add_index=add_index)
    assert jnp.allclose(out3, ref3, atol=1e-3, rtol=1e-3), "mismatch (add_vec)"

    print("KERNEL_OK")
</pallas_src>

<mosaic_0001>
module attributes {stable_mosaic.version = 11 : i64} {
  func.func @_weak_kernel(%arg0: i32, %arg1: memref<16x24xf32, #tpu.memory_space<vmem>>, %arg2: memref<24x16xf32, #tpu.memory_space<vmem>>, %arg3: memref<1x16xf32, #tpu.memory_space<vmem>>, %arg4: memref<16x16xf32, #tpu.memory_space<vmem>>) attributes {dimension_semantics = [#tpu.dimension_semantics<parallel>], iteration_bounds = array<i64: 1>, scalar_prefetch = 0 : i64, scratch_operands = 0 : i64, tpu.core_type = #tpu.core_type<tc>, window_params = [{transform_indices = @transform_0, window_bounds = array<i64: 16, 24>}, {pipeline_mode = #tpu.pipeline_mode<synchronous>, transform_indices = @transform_1, window_bounds = array<i64: 24, 16>}, {pipeline_mode = #tpu.pipeline_mode<synchronous>, transform_indices = @transform_2, window_bounds = array<i64: 1, 16>}, {transform_indices = @transform_3, window_bounds = array<i64: 16, 16>}]} {
    %c0 = arith.constant 0 : index
    %c0_0 = arith.constant 0 : index
    %0 = vector.load %arg1[%c0, %c0_0] : memref<16x24xf32, #tpu.memory_space<vmem>>, vector<16x24xf32>
    %c0_1 = arith.constant 0 : index
    %c0_2 = arith.constant 0 : index
    %1 = vector.load %arg2[%c0_1, %c0_2] : memref<24x16xf32, #tpu.memory_space<vmem>>, vector<24x16xf32>
    %cst = arith.constant dense<0.000000e+00> : vector<16x16xf32>
    %2 = tpu.matmul %0, %1, %cst {dimension_numbers = #tpu.dot_dimension_numbers<[1], [0], [0], [1], [0, 0, 1, 1], [], []>} : vector<16x24xf32>, vector<24x16xf32>, vector<16x16xf32> -> vector<16x16xf32>
    %c0_3 = arith.constant 0 : index
    %c0_4 = arith.constant 0 : index
    %3 = vector.load %arg3[%c0_3, %c0_4] : memref<1x16xf32, #tpu.memory_space<vmem>>, vector<1x16xf32>
    %4 = vector.broadcast %3 : vector<1x16xf32> to vector<16x16xf32>
    %5 = arith.addf %2, %4 : vector<16x16xf32>
    %c0_5 = arith.constant 0 : index
    %c0_6 = arith.constant 0 : index
    %6 = vector.load %arg4[%c0_5, %c0_6] : memref<16x16xf32, #tpu.memory_space<vmem>>, vector<16x16xf32>
    tpu.vector_store %arg4[%c0_5, %c0_6], %5 {strides = array<i32>} : memref<16x16xf32, #tpu.memory_space<vmem>>, vector<16x16xf32>,
    return
  }
  func.func @transform_0(%arg0: i32) -> (i32, i32) {
    %c0_i32 = arith.constant 0 : i32
    %c0_i32_0 = arith.constant 0 : i32
    return %arg0, %c0_i32 : i32, i32
  }
  func.func @transform_1(%arg0: i32) -> (i32, i32) {
    %c0_i32 = arith.constant 0 : i32
    %c0_i32_0 = arith.constant 0 : i32
    %c0_i32_1 = arith.constant 0 : i32
    return %c0_i32, %c0_i32_0 : i32, i32
  }
  func.func @transform_2(%arg0: i32) -> (i32, i32) {
    %c0_i32 = arith.constant 0 : i32
    %c0_i32_0 = arith.constant 0 : i32
    %c0_i32_1 = arith.constant 0 : i32
    return %c0_i32, %c0_i32_0 : i32, i32
  }
  func.func @transform_3(%arg0: i32) -> (i32, i32) {
    %c0_i32 = arith.constant 0 : i32
    %c0_i32_0 = arith.constant 0 : i32
    return %arg0, %c0_i32 : i32, i32
  }
}

</mosaic_0001>

<llo_original>
// kernel: tpu_custom_call.1
$region0: #{tpu_custom_call.1}
  #allocation0 [shape = 'u32[]', space=smem, size = 0x4, offset = 0x4, fixed_abs, tag = 'smem constant byte address 0x4 - core index']
  #allocation1 [shape = 'u32[144,128]{1,0:T(1,128)}', space=vmem, size = 0x12000, scoped, tag = 'internal scratch']
  %s0 = inlined_call_operand.vmem [shape: f32[16,24], index: 0, kind: input, shape index: {}]
  %s1 = inlined_call_operand.vmem [shape: f32[24,16], index: 1, kind: input, shape index: {}]
  %s2 = inlined_call_operand.vmem [shape: f32[1,16], index: 2, kind: input, shape index: {}]
  %s3 = inlined_call_operand.hbm [shape: f32[16,16], index: 3, kind: output, shape index: {}]
  %s4 = sld [smem:[#allocation0]]
  $region22: #{tpu_custom_call.1} parent=0
    _
  %s6 = ssub.s32 1, %s4
  %s7 = scalar_select 0, %s6, %s4
  $region1: #{tpu_custom_call.1} parent=0
    #allocation2 [shape = 'u8[8192]{0}', space=vmem, size = 0x2000, scoped, tag = 'output window, operand 0, single buffered']
    #allocation3 [shape = 's32[1]{0}', space=sflag, size = 0x4, scoped, tag = 'scoped memory for tpu_custom_call.1']
    %8 = vsyncpa [#allocation3], 0
    // Predicated region
    $region2: #{tpu_custom_call.1} parent=1 // pred_check
      _
    $region3: #{tpu_custom_call.1} parent=1 // pred_check_branch
      %10 = sbr.rel (0) target = $region5
    $region4: #{tpu_custom_call.1} parent=1 // pred_region
      _
    $region5: #{tpu_custom_call.1} parent=1 // pred_fallthru
      _
    // Predicated region
    $region6: #{tpu_custom_call.1} parent=1 // pred_check
      _
    $region7: #{tpu_custom_call.1} parent=1 // pred_check_branch
      %12 = sbr.rel (0) target = $region9
    $region8: #{tpu_custom_call.1} parent=1 // pred_region
      _
    $region9: #{tpu_custom_call.1} parent=1 // pred_fallthru
      _
    // Predicated region
    $region10: #{tpu_custom_call.1} parent=1 // pred_check
      _
    $region11: #{tpu_custom_call.1} parent=1 // pred_check_branch
      %14 = sbr.rel (0) target = $region13
    $region12: #{tpu_custom_call.1} parent=1 // pred_region
      _
    $region13: #{tpu_custom_call.1} parent=1 // pred_fallthru
      _
    %v15 = vld [vmem:[%s0] sm:$0xff]
    %v16 = vld [vmem:[%s0 + $0x8] sm:$0xff]
    %v17 = vld [vmem:[%s1] sm:$0xff]
    %v18 = vld [vmem:[%s1 + $0x8] sm:$0xff]
    %v19 = vld [vmem:[%s1 + $0x10] sm:$0xff]
    %v20 = vld [vmem:[%s2] sm:$0x1]
    %v22 = vlaneseq
    %v23 = vshrl.u32 %v22, 7
    %v24 = vsub.s32 0, %v23
    %v25 = vrot.slane %v20, %v24
    %vm27 = vcmask 195584
    %v29 = vsel %vm27, %v15, 0
    %v32 = vsel %vm27, %v16, 0
    %34 = vmatprep.subr.mxu0 0.0
    %35 = vmatpush1.msra.mxu0 0.0
    %36 = vmatprep.subr.mxu0 0.0
    %37 = vmatpush1.msra.mxu0 0.0
    %38 = vmatprep.subr.mxu0 0.0
    %39 = vmatpush1.msra.mxu0 0.0
    %40 = vmatprep.subr.mxu0 0.0
    %41 = vmatpush1.msra.mxu0 0.0
    %42 = vmatprep.subr.mxu0 0.0
    %43 = vmatpush1.msra.mxu0 0.0
    %44 = vmatprep.subr.mxu0 0.0
    %45 = vmatpush1.msra.mxu0 0.0
    %46 = vmatprep.subr.mxu0 0.0
    %47 = vmatpush1.msra.mxu0 0.0
    %48 = vmatprep.subr.mxu0 0.0
    %49 = vmatpush1.msra.mxu0 0.0
    %50 = vmatprep.subr.mxu0 0.0
    %51 = vmatpush1.msra.mxu0 0.0
    %52 = vmatprep.subr.mxu0 0.0
    %53 = vmatpush1.msra.mxu0 0.0
    %54 = vmatprep.subr.mxu0 0.0
    %55 = vmatpush1.msra.mxu0 0.0
    %56 = vmatprep.subr.mxu0 0.0
    %57 = vmatpush1.msra.mxu0 0.0
    %58 = vmatprep.subr.mxu0 0.0
    %59 = vmatpush1.msra.mxu0 0.0
    %60 = vmatprep.subr.mxu0 0.0
    %61 = vmatpush1.msra.mxu0 %v19
    %62 = vmatprep.subr.mxu0 0.0
    %63 = vmatpush1.msra.mxu0 %v18
    %64 = vmatprep.subr.mxu0 0.0
    %65 = vmatpush1.msra.mxu0 %v17
    %66 = vmatprep.subr.mxu0 0.0
    %67 = vmatpush2.msra.mxu0 0.0
    %68 = vmatprep.subr.mxu0 0.0
    %69 = vmatpush2.msra.mxu0 0.0
    %70 = vmatprep.subr.mxu0 0.0
    %71 = vmatpush2.msra.mxu0 0.0
    %72 = vmatprep.subr.mxu0 0.0
    %73 = vmatpush2.msra.mxu0 0.0
    %74 = vmatprep.subr.mxu0 0.0
    %75 = vmatpush2.msra.mxu0 0.0
    %76 = vmatprep.subr.mxu0 0.0
    %77 = vmatpush2.msra.mxu0 0.0
    %78 = vmatprep.subr.mxu0 0.0
    %79 = vmatpush2.msra.mxu0 0.0
    %80 = vmatprep.subr.mxu0 0.0
    %81 = vmatpush2.msra.mxu0 0.0
    %82 = vmatprep.subr.mxu0 0.0
    %83 = vmatpush2.msra.mxu0 0.0
    %84 = vmatprep.subr.mxu0 0.0
    %85 = vmatpush2.msra.mxu0 0.0
    %86 = vmatprep.subr.mxu0 0.0
    %87 = vmatpush2.msra.mxu0 0.0
    %88 = vmatprep.subr.mxu0 0.0
    %89 = vmatpush2.msra.mxu0 0.0
    %90 = vmatprep.subr.mxu0 0.0
    %91 = vmatpush2.msra.mxu0 0.0
    %92 = vmatprep.subr.mxu0 0.0
    %93 = vmatpush2.msra.mxu0 0.0
    %94 = vmatprep.subr.mxu0 0.0
    %95 = vmatpush2.msra.mxu0 0.0
    %96 = vmatprep.subr.mxu0 0.0
    %97 = vmatpush2.msra.mxu0 0.0
    %98 = vmatprep.mubr.f32.mxu0 0.0
    %99 = vmatmul.mubr.f32.gmra.mxu0 %v29
    %v100 = vpop.f32.mrf.mxu0
    %v101 = vadd.f32 %v25, %v100
    %v102 = vpop.f32.mrf.mxu0
    %103 = vmatprep.mubr.f32.mxu0 0.0
    %104 = vmatmul.mubr.f32.gmra.mxu0 %v32
    %v105 = vpop.f32.mrf.mxu0
    %v106 = vadd.f32 %v25, %v105
    %v107 = vpop.f32.mrf.mxu0
    %108 = vdwg.mxu0
    %vm109 = vcmask 130048
    %110 = vst.msk [vmem:[#allocation2] sm:$0xff] %vm109, %v101
    %111 = vst.msk [vmem:[#allocation2 + $0x8] sm:$0xff] %vm109, %v106
    // Predicated region
    $region14: #{tpu_custom_call.1} parent=1 // pred_check
      _
    $region15: #{tpu_custom_call.1} parent=1 // pred_check_branch
      %113 = sbr.rel (0) target = $region17
    $region16: #{tpu_custom_call.1} parent=1 // pred_region
      %s115 = ssub.s32 256, 256
      %116 = vsyncadd [#allocation3], %s115
      %s117 = sshll.u32 [#allocation2], 4
      %s118 = int_to_ptr.vmem [resolvable:$true] %s117
      %123 = dma.vmem_to_hbm [thread:$0]  %s118, 256, %s3, [#allocation3], 128, 128, 8
    $region17: #{tpu_custom_call.1} parent=1 // pred_fallthru
      _
    // Predicated region
    $region18: #{tpu_custom_call.1} parent=1 // pred_check
      _
    $region19: #{tpu_custom_call.1} parent=1 // pred_check_branch
      %125 = sbr.rel (0) target = $region21
    $region20: #{tpu_custom_call.1} parent=1 // pred_region
      %126 = dma.done [#allocation3], 256
    $region21: #{tpu_custom_call.1} parent=1 // pred_fallthru
      _
    %127 = vsyncpa [#allocation3], 1

</llo_original>
